<compile_context>
chip_gen: v6e
topology: v6e:2x2x1
jax: 0.10.0
libtpu: 0.0.40
codegen_flags: <defaults>
</compile_context>

<pallas_src>
import functools

import jax
import jax.numpy as jnp
from jax.experimental import pallas as pl
from jax.experimental.pallas import tpu as pltpu

INPUT_SIZE = 5
HIDDEN = 64
N = 7
OUTPUT_SIZE = N

LANE = 128          # lane-dense padded output width
MAX_TB = 1024       # batch tile; safe for v7x (64 MiB VMEM) and below


def _round_up(x, m):
    return (x + m - 1) // m * m


def mlp_kernel(x_ref, w1_ref, b1_ref, w2_ref, b2_ref, o_ref):
    # fc1 (bf16 x bf16 -> f32 accumulate) + bias + ReLU, all in f32.
    h = jnp.dot(x_ref[...], w1_ref[...], preferred_element_type=jnp.float32)
    h = jnp.maximum(h + b1_ref[...], 0.0)                       # (TB, 64)
    # fc2 into the lane-padded (TB, 128) output slab.
    y = jnp.dot(h.astype(w2_ref.dtype), w2_ref[...],
                preferred_element_type=jnp.float32)
    o_ref[...] = (y + b2_ref[...]).astype(o_ref.dtype)          # unmasked store


@functools.partial(jax.jit, static_argnames=("tb",))
def simple_net_forward(x, w1, b1, w2, b2, *, tb=MAX_TB):
    """x: (B, 5) f32; w1: (5, 64); b1: (1, 64); w2: (64, 7); b2: (1, 7) -> (B, 7) f32."""
    B = x.shape[0]

    # Batch tiling: largest tile up to MAX_TB, multiple of 8 (sublane aligned).
    TB = min(tb, _round_up(B, 8))
    B_pad = _round_up(B, TB)

    # bf16 inputs/weights halve the dominant HBM read traffic; f32 accumulation
    # inside the kernel keeps the math equivalent to the PyTorch forward.
    x_p = jnp.pad(x, ((0, B_pad - B), (0, 0))).astype(jnp.bfloat16)
    w1_b = w1.astype(jnp.bfloat16)
    # Lane-dense fc2: zero-pad the 7 output columns up to 128.
    w2_p = jnp.pad(w2, ((0, 0), (0, LANE - OUTPUT_SIZE))).astype(jnp.bfloat16)
    b2_p = jnp.pad(b2, ((0, 0), (0, LANE - OUTPUT_SIZE))).astype(jnp.float32)
    b1_f = b1.astype(jnp.float32)

    grid = (B_pad // TB,)
    vmem = pltpu.MemorySpace.VMEM

    out_pad = pl.pallas_call(
        mlp_kernel,
        out_shape=jax.ShapeDtypeStruct((B_pad, LANE), jnp.float32),
        grid=grid,
        in_specs=[
            # x: one batch tile per grid step (pipelined).
            pl.BlockSpec((TB, INPUT_SIZE), lambda i: (i, 0), memory_space=vmem),
            # weights/biases: same block every step -> stay resident in VMEM.
            pl.BlockSpec((INPUT_SIZE, HIDDEN), lambda i: (0, 0), memory_space=vmem),
            pl.BlockSpec((1, HIDDEN), lambda i: (0, 0), memory_space=vmem),
            pl.BlockSpec((HIDDEN, LANE), lambda i: (0, 0), memory_space=vmem),
            pl.BlockSpec((1, LANE), lambda i: (0, 0), memory_space=vmem),
        ],
        out_specs=pl.BlockSpec((TB, LANE), lambda i: (i, 0), memory_space=vmem),
        compiler_params=pltpu.CompilerParams(
            dimension_semantics=("parallel",),  # megacore split on v7x
        ),
    )(x_p, w1_b, b1_f, w2_p, b2_p)

    return out_pad[:B, :OUTPUT_SIZE]


def init_params(key):
    """Deterministic init mimicking PyTorch nn.Linear default (uniform +/- 1/sqrt(fan_in))."""
    k1, k2, k3, k4 = jax.random.split(key, 4)
    bound1 = 1.0 / jnp.sqrt(INPUT_SIZE)
    bound2 = 1.0 / jnp.sqrt(HIDDEN)
    w1 = jax.random.uniform(k1, (INPUT_SIZE, HIDDEN), jnp.float32, -bound1, bound1)
    b1 = jax.random.uniform(k2, (1, HIDDEN), jnp.float32, -bound1, bound1)
    w2 = jax.random.uniform(k3, (HIDDEN, OUTPUT_SIZE), jnp.float32, -bound2, bound2)
    b2 = jax.random.uniform(k4, (1, OUTPUT_SIZE), jnp.float32, -bound2, bound2)
    return w1, b1, w2, b2


if __name__ == "__main__":
    key = jax.random.PRNGKey(0)
    pkey, xkey = jax.random.split(key)
    w1, b1, w2, b2 = init_params(pkey)

    batch = 8
    x = jax.random.normal(xkey, (batch, INPUT_SIZE), jnp.float32)

    out = simple_net_forward(x, w1, b1, w2, b2)
    out = jax.block_until_ready(out)
    assert out.shape == (batch, OUTPUT_SIZE)
    assert out.dtype == jnp.float32

    # Reference with the same bf16-input / f32-accumulate math as the kernel.
    xb = x.astype(jnp.bfloat16)
    w1b = w1.astype(jnp.bfloat16)
    w2b = w2.astype(jnp.bfloat16)
    h_ref = jnp.maximum(
        jnp.dot(xb, w1b, preferred_element_type=jnp.float32) + b1, 0.0)
    ref = jnp.dot(h_ref.astype(jnp.bfloat16), w2b,
                  preferred_element_type=jnp.float32) + b2
    assert jnp.allclose(out, ref, atol=2e-2, rtol=2e-2), (
        jnp.max(jnp.abs(out - ref)))

    print("KERNEL_OK")
</pallas_src>

<mosaic_0001>
module attributes {stable_mosaic.version = 11 : i64} {
  func.func @mlp_kernel(%arg0: i32, %arg1: memref<8x5xbf16, #tpu.memory_space<vmem>>, %arg2: memref<5x64xbf16, #tpu.memory_space<vmem>>, %arg3: memref<1x64xf32, #tpu.memory_space<vmem>>, %arg4: memref<64x128xbf16, #tpu.memory_space<vmem>>, %arg5: memref<1x128xf32, #tpu.memory_space<vmem>>, %arg6: memref<8x128xf32, #tpu.memory_space<vmem>>) attributes {dimension_semantics = [#tpu.dimension_semantics<parallel>], iteration_bounds = array<i64: 1>, scalar_prefetch = 0 : i64, scratch_operands = 0 : i64, tpu.core_type = #tpu.core_type<tc>, window_params = [{transform_indices = @transform_0, window_bounds = array<i64: 8, 5>}, {pipeline_mode = #tpu.pipeline_mode<synchronous>, transform_indices = @transform_1, window_bounds = array<i64: 5, 64>}, {pipeline_mode = #tpu.pipeline_mode<synchronous>, transform_indices = @transform_2, window_bounds = array<i64: 1, 64>}, {pipeline_mode = #tpu.pipeline_mode<synchronous>, transform_indices = @transform_3, window_bounds = array<i64: 64, 128>}, {pipeline_mode = #tpu.pipeline_mode<synchronous>, transform_indices = @transform_4, window_bounds = array<i64: 1, 128>}, {transform_indices = @transform_5, window_bounds = array<i64: 8, 128>}]} {
    %c0 = arith.constant 0 : index
    %c0_0 = arith.constant 0 : index
    %0 = vector.load %arg1[%c0, %c0_0] : memref<8x5xbf16, #tpu.memory_space<vmem>>, vector<8x5xbf16>
    %c0_1 = arith.constant 0 : index
    %c0_2 = arith.constant 0 : index
    %1 = vector.load %arg2[%c0_1, %c0_2] : memref<5x64xbf16, #tpu.memory_space<vmem>>, vector<5x64xbf16>
    %cst = arith.constant dense<0.000000e+00> : vector<8x64xf32>
    %2 = tpu.matmul %0, %1, %cst {dimension_numbers = #tpu.dot_dimension_numbers<[1], [0], [0], [1], [0, 0, 1, 1], [], []>} : vector<8x5xbf16>, vector<5x64xbf16>, vector<8x64xf32> -> vector<8x64xf32>
    %c0_3 = arith.constant 0 : index
    %c0_4 = arith.constant 0 : index
    %3 = vector.load %arg3[%c0_3, %c0_4] : memref<1x64xf32, #tpu.memory_space<vmem>>, vector<1x64xf32>
    %4 = vector.broadcast %3 : vector<1x64xf32> to vector<8x64xf32>
    %5 = arith.addf %2, %4 : vector<8x64xf32>
    %cst_5 = arith.constant 0.000000e+00 : f32
    %6 = vector.broadcast %cst_5 : f32 to vector<8x64xf32>
    %7 = arith.maximumf %5, %6 : vector<8x64xf32>
    %8 = arith.truncf %7 : vector<8x64xf32> to vector<8x64xbf16>
    %c0_6 = arith.constant 0 : index
    %c0_7 = arith.constant 0 : index
    %9 = vector.load %arg4[%c0_6, %c0_7] : memref<64x128xbf16, #tpu.memory_space<vmem>>, vector<64x128xbf16>
    %cst_8 = arith.constant dense<0.000000e+00> : vector<8x128xf32>
    %10 = tpu.matmul %8, %9, %cst_8 {dimension_numbers = #tpu.dot_dimension_numbers<[1], [0], [0], [1], [0, 0, 1, 1], [], []>} : vector<8x64xbf16>, vector<64x128xbf16>, vector<8x128xf32> -> vector<8x128xf32>
    %c0_9 = arith.constant 0 : index
    %c0_10 = arith.constant 0 : index
    %11 = vector.load %arg5[%c0_9, %c0_10] : memref<1x128xf32, #tpu.memory_space<vmem>>, vector<1x128xf32>
    %12 = vector.broadcast %11 : vector<1x128xf32> to vector<8x128xf32>
    %13 = arith.addf %10, %12 : vector<8x128xf32>
    %c0_11 = arith.constant 0 : index
    %c0_12 = arith.constant 0 : index
    %14 = vector.load %arg6[%c0_11, %c0_12] : memref<8x128xf32, #tpu.memory_space<vmem>>, vector<8x128xf32>
    tpu.vector_store %arg6[%c0_11, %c0_12], %13 {strides = array<i32>} : memref<8x128xf32, #tpu.memory_space<vmem>>, vector<8x128xf32>,
    return
  }
  func.func @transform_0(%arg0: i32) -> (i32, i32) {
    %c0_i32 = arith.constant 0 : i32
    %c0_i32_0 = arith.constant 0 : i32
    return %arg0, %c0_i32 : i32, i32
  }
  func.func @transform_1(%arg0: i32) -> (i32, i32) {
    %c0_i32 = arith.constant 0 : i32
    %c0_i32_0 = arith.constant 0 : i32
    %c0_i32_1 = arith.constant 0 : i32
    return %c0_i32, %c0_i32_0 : i32, i32
  }
  func.func @transform_2(%arg0: i32) -> (i32, i32) {
    %c0_i32 = arith.constant 0 : i32
    %c0_i32_0 = arith.constant 0 : i32
    %c0_i32_1 = arith.constant 0 : i32
    return %c0_i32, %c0_i32_0 : i32, i32
  }
  func.func @transform_3(%arg0: i32) -> (i32, i32) {
    %c0_i32 = arith.constant 0 : i32
    %c0_i32_0 = arith.constant 0 : i32
    %c0_i32_1 = arith.constant 0 : i32
    return %c0_i32, %c0_i32_0 : i32, i32
  }
  func.func @transform_4(%arg0: i32) -> (i32, i32) {
    %c0_i32 = arith.constant 0 : i32
    %c0_i32_0 = arith.constant 0 : i32
    %c0_i32_1 = arith.constant 0 : i32
    return %c0_i32, %c0_i32_0 : i32, i32
  }
  func.func @transform_5(%arg0: i32) -> (i32, i32) {
    %c0_i32 = arith.constant 0 : i32
    %c0_i32_0 = arith.constant 0 : i32
    return %arg0, %c0_i32 : i32, i32
  }
}

</mosaic_0001>

<llo_original>
// kernel: simple_net_forward.1
$region0: #{simple_net_forward.1}
  #allocation0 [shape = 'u32[]', space=smem, size = 0x4, offset = 0x4, fixed_abs, tag = 'smem constant byte address 0x4 - core index']
  #allocation1 [shape = 'u32[144,128]{1,0:T(1,128)}', space=vmem, size = 0x12000, scoped, tag = 'internal scratch']
  %s0 = inlined_call_operand.vmem [shape: bf16[8,5], index: 0, kind: input, shape index: {}]
  %s1 = inlined_call_operand.vmem [shape: bf16[5,64], index: 1, kind: input, shape index: {}]
  %s2 = inlined_call_operand.vmem [shape: f32[1,64], index: 2, kind: input, shape index: {}]
  %s3 = inlined_call_operand.vmem [shape: bf16[64,128], index: 3, kind: input, shape index: {}]
  %s4 = inlined_call_operand.vmem [shape: f32[1,128], index: 4, kind: input, shape index: {}]
  %s5 = inlined_call_operand.hbm [shape: f32[8,128], index: 5, kind: output, shape index: {}]
  %s6 = sld [smem:[#allocation0]]
  $region30: #{simple_net_forward.1} parent=0
    _
  %s8 = ssub.s32 1, %s6
  %s9 = scalar_select 0, %s8, %s6
  $region1: #{simple_net_forward.1} parent=0
    #allocation2 [shape = 'u8[4096]{0}', space=vmem, size = 0x1000, scoped, tag = 'output window, operand 0, single buffered']
    #allocation3 [shape = 's32[1]{0}', space=sflag, size = 0x4, scoped, tag = 'scoped memory for simple_net_forward.1']
    %10 = vsyncpa [#allocation3], 0
    // Predicated region
    $region2: #{simple_net_forward.1} parent=1 // pred_check
      _
    $region3: #{simple_net_forward.1} parent=1 // pred_check_branch
      %12 = sbr.rel (0) target = $region5
    $region4: #{simple_net_forward.1} parent=1 // pred_region
      _
    $region5: #{simple_net_forward.1} parent=1 // pred_fallthru
      _
    // Predicated region
    $region6: #{simple_net_forward.1} parent=1 // pred_check
      _
    $region7: #{simple_net_forward.1} parent=1 // pred_check_branch
      %14 = sbr.rel (0) target = $region9
    $region8: #{simple_net_forward.1} parent=1 // pred_region
      _
    $region9: #{simple_net_forward.1} parent=1 // pred_fallthru
      _
    // Predicated region
    $region10: #{simple_net_forward.1} parent=1 // pred_check
      _
    $region11: #{simple_net_forward.1} parent=1 // pred_check_branch
      %16 = sbr.rel (0) target = $region13
    $region12: #{simple_net_forward.1} parent=1 // pred_region
      _
    $region13: #{simple_net_forward.1} parent=1 // pred_fallthru
      _
    // Predicated region
    $region14: #{simple_net_forward.1} parent=1 // pred_check
      _
    $region15: #{simple_net_forward.1} parent=1 // pred_check_branch
      %18 = sbr.rel (0) target = $region17
    $region16: #{simple_net_forward.1} parent=1 // pred_region
      _
    $region17: #{simple_net_forward.1} parent=1 // pred_fallthru
      _
    // Predicated region
    $region18: #{simple_net_forward.1} parent=1 // pred_check
      _
    $region19: #{simple_net_forward.1} parent=1 // pred_check_branch
      %20 = sbr.rel (0) target = $region21
    $region20: #{simple_net_forward.1} parent=1 // pred_region
      _
    $region21: #{simple_net_forward.1} parent=1 // pred_fallthru
      _
    %v22 = vld [vmem:[%s0] sm:$0xf]
    %v23 = vld [vmem:[%s1] sm:$0x7]
    %v24 = vld [vmem:[%s2] sm:$0x1]
    %v26 = vlaneseq
    %v27 = vshrl.u32 %v26, 7
    %v28 = vsub.s32 0, %v27
    %v29 = vrot.slane %v24, %v28
    %vm31 = vcmask 39936
    %v33 = vsel %vm31, %v22, 0
    %vm35 = vcmask 1041408
    %vm36 = vcmask 1042432
    %v37 = vsel %vm35, 4294967295, 65535
    %v38 = vsel %vm36, %v37, 0
    %v40 = vand.u32 %v23, %v38
    %42 = vmatprep.subr.bf16.mxu0 0
    %43 = vmatpush1.bf16.msra.mxu0 0
    %44 = vmatprep.subr.bf16.mxu0 0
    %45 = vmatpush1.bf16.msra.mxu0 0
    %46 = vmatprep.subr.bf16.mxu0 0
    %47 = vmatpush1.bf16.msra.mxu0 0
    %48 = vmatprep.subr.bf16.mxu0 0
    %49 = vmatpush1.bf16.msra.mxu0 0
    %50 = vmatprep.subr.bf16.mxu0 0
    %51 = vmatpush1.bf16.msra.mxu0 0
    %52 = vmatprep.subr.bf16.mxu0 0
    %53 = vmatpush1.bf16.msra.mxu0 0
    %54 = vmatprep.subr.bf16.mxu0 0
    %55 = vmatpush1.bf16.msra.mxu0 0
    %56 = vmatprep.subr.bf16.mxu0 0
    %57 = vmatpush1.bf16.msra.mxu0 %v40
    %58 = vmatprep.subr.bf16.mxu0 0
    %59 = vmatpush2.bf16.msra.mxu0 0
    %60 = vmatprep.subr.bf16.mxu0 0
    %61 = vmatpush2.bf16.msra.mxu0 0
    %62 = vmatprep.subr.bf16.mxu0 0
    %63 = vmatpush2.bf16.msra.mxu0 0
    %64 = vmatprep.subr.bf16.mxu0 0
    %65 = vmatpush2.bf16.msra.mxu0 0
    %66 = vmatprep.subr.bf16.mxu0 0
    %67 = vmatpush2.bf16.msra.mxu0 0
    %68 = vmatprep.subr.bf16.mxu0 0
    %69 = vmatpush2.bf16.msra.mxu0 0
    %70 = vmatprep.subr.bf16.mxu0 0
    %71 = vmatpush2.bf16.msra.mxu0 0
    %72 = vmatprep.subr.bf16.mxu0 0
    %73 = vmatpush2.bf16.msra.mxu0 0
    %74 = vmatprep.mubr.bf16.mxu0 0
    %75 = vmatmul.mubr.bf16.gmra.mxu0 %v33
    %v76 = vpop.f32.mrf.mxu0
    %v77 = vadd.f32 %v29, %v76
    %v78 = vpop.f32.mrf.mxu0
    %v79 = vpop.f32.mrf.mxu0
    %v80 = vpop.f32.mrf.mxu0
    %81 = vdwg.mxu0
    %v82 = vmax.f32 %v77, 0.0
    %v83 = vpack.c.bf16 %v82, %v82
    %v84 = vld [vmem:[%s3] sm:$0xf]
    %v85 = vld [vmem:[%s3 + $0x4] sm:$0xf]
    %v86 = vld [vmem:[%s3 + $0x8] sm:$0xf]
    %v87 = vld [vmem:[%s3 + $0xc] sm:$0xf]
    %v88 = vld [vmem:[%s3 + $0x10] sm:$0xf]
    %v89 = vld [vmem:[%s3 + $0x14] sm:$0xf]
    %v90 = vld [vmem:[%s3 + $0x18] sm:$0xf]
    %v91 = vld [vmem:[%s3 + $0x1c] sm:$0xf]
    %v92 = vld [vmem:[%s4] sm:$0x1]
    %v94 = vlaneseq
    %v95 = vshrl.u32 %v94, 7
    %v96 = vsub.s32 0, %v95
    %v97 = vrot.slane %v92, %v96
    %v107 = vunpack.c.l.b16 %v84
    %v108 = vunpack.c.l.b16 %v85
    %v109 = vunpack.c.l.b16 %v86
    %v110 = vunpack.c.l.b16 %v87
    %v111 = vunpack.c.l.b16 %v88
    %v112 = vunpack.c.l.b16 %v89
    %v113 = vunpack.c.l.b16 %v90
    %v114 = vunpack.c.l.b16 %v91
    %v115 = vpack.c.b16 %v108, %v107
    %v116 = vpack.c.b16 %v110, %v109
    %v117 = vpack.c.b16 %v112, %v111
    %v118 = vpack.c.b16 %v114, %v113
    %vm123 = vcmask 523264
    %v125 = vsel %vm123, %v83, 0
    %127 = vmatprep.subr.bf16.mxu0 0
    %128 = vmatpush1.bf16.msra.mxu0 0
    %129 = vmatprep.subr.bf16.mxu0 0
    %130 = vmatpush1.bf16.msra.mxu0 0
    %131 = vmatprep.subr.bf16.mxu0 0
    %132 = vmatpush1.bf16.msra.mxu0 0
    %133 = vmatprep.subr.bf16.mxu0 0
    %134 = vmatpush1.bf16.msra.mxu0 0
    %135 = vmatprep.subr.bf16.mxu0 0
    %136 = vmatpush1.bf16.msra.mxu0 %v118
    %137 = vmatprep.subr.bf16.mxu0 0
    %138 = vmatpush1.bf16.msra.mxu0 %v117
    %139 = vmatprep.subr.bf16.mxu0 0
    %140 = vmatpush1.bf16.msra.mxu0 %v116
    %141 = vmatprep.subr.bf16.mxu0 0
    %142 = vmatpush1.bf16.msra.mxu0 %v115
    %143 = vmatprep.subr.bf16.mxu0 0
    %144 = vmatpush2.bf16.msra.mxu0 0
    %145 = vmatprep.subr.bf16.mxu0 0
    %146 = vmatpush2.bf16.msra.mxu0 0
    %147 = vmatprep.subr.bf16.mxu0 0
    %148 = vmatpush2.bf16.msra.mxu0 0
    %149 = vmatprep.subr.bf16.mxu0 0
    %150 = vmatpush2.bf16.msra.mxu0 0
    %151 = vmatprep.subr.bf16.mxu0 0
    %152 = vmatpush2.bf16.msra.mxu0 0
    %153 = vmatprep.subr.bf16.mxu0 0
    %154 = vmatpush2.bf16.msra.mxu0 0
    %155 = vmatprep.subr.bf16.mxu0 0
    %156 = vmatpush2.bf16.msra.mxu0 0
    %157 = vmatprep.subr.bf16.mxu0 0
    %158 = vmatpush2.bf16.msra.mxu0 0
    %159 = vmatprep.mubr.bf16.mxu0 0
    %160 = vmatmul.mubr.bf16.gmra.mxu0 %v125
    %v161 = vpop.f32.mrf.mxu0
    %v162 = vadd.f32 %v97, %v161
    %v163 = vpop.f32.mrf.mxu0
    %v164 = vpop.f32.mrf.mxu0
    %v165 = vpop.f32.mrf.mxu0
    %166 = vdwg.mxu0
    %167 = vst [vmem:[#allocation2] sm:$0xff] %v162
    // Predicated region
    $region22: #{simple_net_forward.1} parent=1 // pred_check
      _
    $region23: #{simple_net_forward.1} parent=1 // pred_check_branch
      %169 = sbr.rel (0) target = $region25
    $region24: #{simple_net_forward.1} parent=1 // pred_region
      %s171 = ssub.s32 128, 128
      %172 = vsyncadd [#allocation3], %s171
      %s174 = sshll.u32 [#allocation2], 4
      %s175 = int_to_ptr.vmem [resolvable:$true] %s174
      %177 = dma.vmem_to_hbm [thread:$0]  %s175, 128, %s5, [#allocation3]
    $region25: #{simple_net_forward.1} parent=1 // pred_fallthru
      _
    // Predicated region
    $region26: #{simple_net_forward.1} parent=1 // pred_check
      _
    $region27: #{simple_net_forward.1} parent=1 // pred_check_branch
      %179 = sbr.rel (0) target = $region29
    $region28: #{simple_net_forward.1} parent=1 // pred_region
      %180 = dma.done [#allocation3], 128
    $region29: #{simple_net_forward.1} parent=1 // pred_fallthru
      _
    %181 = vsyncpa [#allocation3], 1

</llo_original>
